<compile_context>
chip_gen: v6e
topology: v6e:2x2x1
jax: 0.10.0
libtpu: 0.0.40
codegen_flags: <defaults>
</compile_context>

<pallas_src>
import jax
import jax.numpy as jnp
from jax.experimental import pallas as pl
from jax.experimental.pallas import tpu as pltpu


def _round_up(x, m):
    return ((x + m - 1) // m) * m


def _actor_kernel(scale_ref, x_ref, w1_ref, b1_ref, w2_ref, b2_ref,
                  w3_ref, b3_ref, o_ref):
    # x_ref: (n_input, TB) tile of the feature-major state (batch on lanes).
    x = x_ref[...].astype(jnp.float32)                          # torch .float()

    h1 = jnp.dot(w1_ref[...], x, preferred_element_type=jnp.float32) + b1_ref[...]
    h1 = jnp.maximum(h1, 0.0)                                   # relu

    h2 = jnp.dot(w2_ref[...], h1, preferred_element_type=jnp.float32) + b2_ref[...]
    h2 = jnp.maximum(h2, 0.0)                                   # relu

    a = jnp.dot(w3_ref[...], h2, preferred_element_type=jnp.float32) + b3_ref[...]
    # Lane-dense (n_output, TB) store; scale is a scalar-immediate VPU multiply.
    o_ref[...] = scale_ref[0, 0] * jnp.tanh(a)


def _choose_batch_tile(B, batch_tile):
    # Large tile to amortize per-step fixed cost, clamped so per-step VMEM
    # stays well under the scoped default on every generation, and capped at
    # half the (128-aligned) batch so the grid has >=2 steps for v7x's 2 TCs.
    b128 = _round_up(max(int(B), 1), 128)
    tb = min(int(batch_tile), 16384, _round_up(pl.cdiv(b128, 2), 128))
    return max(tb, 128)


def bounded_actor_forward(state, params, *, batch_tile=8192,
                          state_is_feature_major=False,
                          return_feature_major=False):
    """Fused BoundedActorNetwork forward.

    state:
      - default (torch-compatible): (B, 1, n_input) or (B, n_input), any float
        dtype (bf16 OK).  Costs one wrapper-side HBM transpose.
      - state_is_feature_major=True (preferred fast path): (n_input, B), used
        directly with no wrapper transpose.
    Returns (B, n_output) float32 actions, or (n_output, B) if
    return_feature_major=True.
    """
    if state_is_feature_major:
        if state.ndim != 2:
            raise ValueError("feature-major state must be (n_input, B)")
        xT = state                                   # no HBM transpose
        n_input, B = xT.shape
    else:
        # Glue: replicate torch.squeeze(state, 1)
        if state.ndim == 3 and state.shape[1] == 1:
            state = jnp.squeeze(state, axis=1)
        B, n_input = state.shape
        xT = state.T                                 # compat path: 1 extra HBM pass

    w1, b1 = params["w1"], params["b1"]
    w2, b2 = params["w2"], params["b2"]
    w3, b3 = params["w3"], params["b3"]
    scale = params["action_scaling"]                 # (1, 1) f32 -> SMEM
    F = w1.shape[0]
    n_output = w3.shape[0]

    TB = _choose_batch_tile(B, batch_tile)
    B_pad = _round_up(B, TB)
    if B_pad != B:
        xT = jnp.pad(xT, ((0, 0), (0, B_pad - B)))

    grid = (B_pad // TB,)
    const = lambda i: (0, 0)                         # resident weights/biases

    x_itemsize = jnp.dtype(xT.dtype).itemsize
    w_bytes = sum(int(p.size) * jnp.dtype(p.dtype).itemsize
                  for p in (w1, b1, w2, b2, w3, b3))
    cost = pl.CostEstimate(
        flops=2 * B_pad * (n_input * F + F * F + F * n_output),
        transcendentals=B_pad * n_output,            # tanh
        bytes_accessed=int(B_pad * n_input * x_itemsize
                           + B_pad * n_output * 4 + w_bytes),
    )

    out_T = pl.pallas_call(
        _actor_kernel,
        out_shape=jax.ShapeDtypeStruct((n_output, B_pad), jnp.float32),
        grid=grid,
        in_specs=[
            pl.BlockSpec((1, 1), const, memory_space=pltpu.MemorySpace.SMEM),  # action_scaling
            pl.BlockSpec((n_input, TB), lambda i: (0, i)),                     # state tile (streamed)
            pl.BlockSpec((F, n_input), const),                                 # W1 (resident)
            pl.BlockSpec((F, 1), const),                                       # b1
            pl.BlockSpec((F, F), const),                                       # W2
            pl.BlockSpec((F, 1), const),                                       # b2
            pl.BlockSpec((n_output, F), const),                                # W3
            pl.BlockSpec((n_output, 1), const),                                # b3
        ],
        out_specs=pl.BlockSpec((n_output, TB), lambda i: (0, i)),
        compiler_params=pltpu.CompilerParams(
            dimension_semantics=("parallel",)),      # v7x: shard batch grid over both TCs
        cost_estimate=cost,
    )(scale, xT, w1, b1, w2, b2, w3, b3)

    if return_feature_major:
        return out_T[:, :B]                          # (n_output, B), no transpose
    return out_T[:, :B].T                            # torch-compatible (B, n_output)


def init_params(key, n_input, n_features, n_output, action_scaling):
    k1, k2, k3, kb1, kb2, kb3 = jax.random.split(key, 6)
    relu_gain = 2.0 ** 0.5      # nn.init.calculate_gain('relu')
    lin_gain = 1.0              # nn.init.calculate_gain('linear')

    def xavier(k, fan_out, fan_in, gain):
        limit = gain * (6.0 / (fan_in + fan_out)) ** 0.5
        # torch layout [out_features, in_features]; kernel computes W @ x
        return jax.random.uniform(k, (fan_out, fan_in), jnp.float32, -limit, limit)

    def linear_bias(k, fan_in, fan_out):
        # torch nn.Linear default bias init: U(-1/sqrt(fan_in), 1/sqrt(fan_in))
        bound = 1.0 / fan_in ** 0.5
        return jax.random.uniform(k, (fan_out, 1), jnp.float32, -bound, bound)

    return {
        "w1": xavier(k1, n_features, n_input, relu_gain),
        "b1": linear_bias(kb1, n_input, n_features),
        "w2": xavier(k2, n_features, n_features, relu_gain),
        "b2": linear_bias(kb2, n_features, n_features),
        "w3": xavier(k3, n_output, n_features, lin_gain),
        "b3": linear_bias(kb3, n_features, n_output),
        "action_scaling": jnp.full((1, 1), action_scaling, jnp.float32),
    }


def _reference(x, params):
    h1 = jnp.maximum(x @ params["w1"].T + params["b1"].T, 0.0)
    h2 = jnp.maximum(h1 @ params["w2"].T + params["b2"].T, 0.0)
    return params["action_scaling"][0, 0] * jnp.tanh(h2 @ params["w3"].T + params["b3"].T)


if __name__ == "__main__":
    key = jax.random.PRNGKey(0)
    k_params, k_state, k_state2 = jax.random.split(key, 3)

    # Small shapes consistent with the module (pendulum-like actor):
    batch, n_input, n_features, n_output = 8, 4, 32, 2
    action_scaling = 2.0
    params = init_params(k_params, n_input, n_features, n_output, action_scaling)

    # --- 1) torch-compatible layout: (B, 1, n_input) with squeezable dim -----
    state = jax.random.normal(k_state, (batch, 1, n_input), jnp.float32)
    out = bounded_actor_forward(state, params)
    jax.block_until_ready(out)

    ref = _reference(jnp.squeeze(state, 1).astype(jnp.float32), params)
    assert out.shape == (batch, n_output)
    assert jnp.allclose(out, ref, atol=1e-5, rtol=1e-5), float(jnp.max(jnp.abs(out - ref)))

    # --- 2) preferred fast path: feature-major in/out, multi-step grid -------
    # B=300 -> TB=256, grid=(2,), 212 zero-padded columns sliced off; exercises
    # the "parallel" grid split and the padding path with no wrapper transposes.
    B2 = 300
    xT2 = jax.random.normal(k_state2, (n_input, B2), jnp.float32)
    out2 = bounded_actor_forward(xT2, params, state_is_feature_major=True,
                                 return_feature_major=True)
    jax.block_until_ready(out2)

    ref2 = _reference(xT2.T, params).T
    assert out2.shape == (n_output, B2)
    assert jnp.allclose(out2, ref2, atol=1e-5, rtol=1e-5), float(jnp.max(jnp.abs(out2 - ref2)))

    print("KERNEL_OK")
</pallas_src>

<mosaic_0001>
module attributes {stable_mosaic.version = 11 : i64} {
  func.func @_actor_kernel(%arg0: i32, %arg1: memref<1x1xf32, #tpu.memory_space<smem>>, %arg2: memref<4x128xf32, #tpu.memory_space<vmem>>, %arg3: memref<32x4xf32, #tpu.memory_space<vmem>>, %arg4: memref<32x1xf32, #tpu.memory_space<vmem>>, %arg5: memref<32x32xf32, #tpu.memory_space<vmem>>, %arg6: memref<32x1xf32, #tpu.memory_space<vmem>>, %arg7: memref<2x32xf32, #tpu.memory_space<vmem>>, %arg8: memref<2x1xf32, #tpu.memory_space<vmem>>, %arg9: memref<2x128xf32, #tpu.memory_space<vmem>>) attributes {dimension_semantics = [#tpu.dimension_semantics<parallel>], iteration_bounds = array<i64: 1>, scalar_prefetch = 0 : i64, scratch_operands = 0 : i64, tpu.core_type = #tpu.core_type<tc>, window_params = [{transform_indices = @transform_0, window_bounds = array<i64: 1, 1>}, {transform_indices = @transform_1, window_bounds = array<i64: 4, 128>}, {pipeline_mode = #tpu.pipeline_mode<synchronous>, transform_indices = @transform_2, window_bounds = array<i64: 32, 4>}, {pipeline_mode = #tpu.pipeline_mode<synchronous>, transform_indices = @transform_3, window_bounds = array<i64: 32, 1>}, {pipeline_mode = #tpu.pipeline_mode<synchronous>, transform_indices = @transform_4, window_bounds = array<i64: 32, 32>}, {pipeline_mode = #tpu.pipeline_mode<synchronous>, transform_indices = @transform_5, window_bounds = array<i64: 32, 1>}, {pipeline_mode = #tpu.pipeline_mode<synchronous>, transform_indices = @transform_6, window_bounds = array<i64: 2, 32>}, {pipeline_mode = #tpu.pipeline_mode<synchronous>, transform_indices = @transform_7, window_bounds = array<i64: 2, 1>}, {transform_indices = @transform_8, window_bounds = array<i64: 2, 128>}]} {
    %c0 = arith.constant 0 : index
    %c0_0 = arith.constant 0 : index
    %0 = vector.load %arg2[%c0, %c0_0] : memref<4x128xf32, #tpu.memory_space<vmem>>, vector<4x128xf32>
    %c0_1 = arith.constant 0 : index
    %c0_2 = arith.constant 0 : index
    %1 = vector.load %arg3[%c0_1, %c0_2] : memref<32x4xf32, #tpu.memory_space<vmem>>, vector<32x4xf32>
    %cst = arith.constant dense<0.000000e+00> : vector<32x128xf32>
    %2 = tpu.matmul %1, %0, %cst {dimension_numbers = #tpu.dot_dimension_numbers<[1], [0], [0], [1], [0, 0, 1, 1], [], []>} : vector<32x4xf32>, vector<4x128xf32>, vector<32x128xf32> -> vector<32x128xf32>
    %c0_3 = arith.constant 0 : index
    %c0_4 = arith.constant 0 : index
    %3 = vector.load %arg4[%c0_3, %c0_4] : memref<32x1xf32, #tpu.memory_space<vmem>>, vector<32x1xf32>
    %4 = vector.broadcast %3 : vector<32x1xf32> to vector<32x128xf32>
    %5 = arith.addf %2, %4 : vector<32x128xf32>
    %cst_5 = arith.constant 0.000000e+00 : f32
    %6 = vector.broadcast %cst_5 : f32 to vector<32x128xf32>
    %7 = arith.maximumf %5, %6 : vector<32x128xf32>
    %c0_6 = arith.constant 0 : index
    %c0_7 = arith.constant 0 : index
    %8 = vector.load %arg5[%c0_6, %c0_7] : memref<32x32xf32, #tpu.memory_space<vmem>>, vector<32x32xf32>
    %cst_8 = arith.constant dense<0.000000e+00> : vector<32x128xf32>
    %9 = tpu.matmul %8, %7, %cst_8 {dimension_numbers = #tpu.dot_dimension_numbers<[1], [0], [0], [1], [0, 0, 1, 1], [], []>} : vector<32x32xf32>, vector<32x128xf32>, vector<32x128xf32> -> vector<32x128xf32>
    %c0_9 = arith.constant 0 : index
    %c0_10 = arith.constant 0 : index
    %10 = vector.load %arg6[%c0_9, %c0_10] : memref<32x1xf32, #tpu.memory_space<vmem>>, vector<32x1xf32>
    %11 = vector.broadcast %10 : vector<32x1xf32> to vector<32x128xf32>
    %12 = arith.addf %9, %11 : vector<32x128xf32>
    %cst_11 = arith.constant 0.000000e+00 : f32
    %13 = vector.broadcast %cst_11 : f32 to vector<32x128xf32>
    %14 = arith.maximumf %12, %13 : vector<32x128xf32>
    %c0_12 = arith.constant 0 : index
    %c0_13 = arith.constant 0 : index
    %15 = vector.load %arg7[%c0_12, %c0_13] : memref<2x32xf32, #tpu.memory_space<vmem>>, vector<2x32xf32>
    %cst_14 = arith.constant dense<0.000000e+00> : vector<2x128xf32>
    %16 = tpu.matmul %15, %14, %cst_14 {dimension_numbers = #tpu.dot_dimension_numbers<[1], [0], [0], [1], [0, 0, 1, 1], [], []>} : vector<2x32xf32>, vector<32x128xf32>, vector<2x128xf32> -> vector<2x128xf32>
    %c0_15 = arith.constant 0 : index
    %c0_16 = arith.constant 0 : index
    %17 = vector.load %arg8[%c0_15, %c0_16] : memref<2x1xf32, #tpu.memory_space<vmem>>, vector<2x1xf32>
    %18 = vector.broadcast %17 : vector<2x1xf32> to vector<2x128xf32>
    %19 = arith.addf %16, %18 : vector<2x128xf32>
    %c0_17 = arith.constant 0 : index
    %c0_18 = arith.constant 0 : index
    %20 = memref.load %arg1[%c0_17, %c0_18] : memref<1x1xf32, #tpu.memory_space<smem>>
    %21 = math.tanh %19 : vector<2x128xf32>
    %22 = vector.broadcast %20 : f32 to vector<2x128xf32>
    %23 = arith.mulf %22, %21 : vector<2x128xf32>
    %c0_19 = arith.constant 0 : index
    %c0_20 = arith.constant 0 : index
    %24 = vector.load %arg9[%c0_19, %c0_20] : memref<2x128xf32, #tpu.memory_space<vmem>>, vector<2x128xf32>
    tpu.vector_store %arg9[%c0_19, %c0_20], %23 {strides = array<i32>} : memref<2x128xf32, #tpu.memory_space<vmem>>, vector<2x128xf32>,
    return
  }
  func.func @transform_0(%arg0: i32) -> (i32, i32) {
    %c0_i32 = arith.constant 0 : i32
    %c0_i32_0 = arith.constant 0 : i32
    %c0_i32_1 = arith.constant 0 : i32
    return %c0_i32, %c0_i32_0 : i32, i32
  }
  func.func @transform_1(%arg0: i32) -> (i32, i32) {
    %c0_i32 = arith.constant 0 : i32
    %c0_i32_0 = arith.constant 0 : i32
    return %c0_i32, %arg0 : i32, i32
  }
  func.func @transform_2(%arg0: i32) -> (i32, i32) {
    %c0_i32 = arith.constant 0 : i32
    %c0_i32_0 = arith.constant 0 : i32
    %c0_i32_1 = arith.constant 0 : i32
    return %c0_i32, %c0_i32_0 : i32, i32
  }
  func.func @transform_3(%arg0: i32) -> (i32, i32) {
    %c0_i32 = arith.constant 0 : i32
    %c0_i32_0 = arith.constant 0 : i32
    %c0_i32_1 = arith.constant 0 : i32
    return %c0_i32, %c0_i32_0 : i32, i32
  }
  func.func @transform_4(%arg0: i32) -> (i32, i32) {
    %c0_i32 = arith.constant 0 : i32
    %c0_i32_0 = arith.constant 0 : i32
    %c0_i32_1 = arith.constant 0 : i32
    return %c0_i32, %c0_i32_0 : i32, i32
  }
  func.func @transform_5(%arg0: i32) -> (i32, i32) {
    %c0_i32 = arith.constant 0 : i32
    %c0_i32_0 = arith.constant 0 : i32
    %c0_i32_1 = arith.constant 0 : i32
    return %c0_i32, %c0_i32_0 : i32, i32
  }
  func.func @transform_6(%arg0: i32) -> (i32, i32) {
    %c0_i32 = arith.constant 0 : i32
    %c0_i32_0 = arith.constant 0 : i32
    %c0_i32_1 = arith.constant 0 : i32
    return %c0_i32, %c0_i32_0 : i32, i32
  }
  func.func @transform_7(%arg0: i32) -> (i32, i32) {
    %c0_i32 = arith.constant 0 : i32
    %c0_i32_0 = arith.constant 0 : i32
    %c0_i32_1 = arith.constant 0 : i32
    return %c0_i32, %c0_i32_0 : i32, i32
  }
  func.func @transform_8(%arg0: i32) -> (i32, i32) {
    %c0_i32 = arith.constant 0 : i32
    %c0_i32_0 = arith.constant 0 : i32
    return %c0_i32, %arg0 : i32, i32
  }
}

</mosaic_0001>

<llo_original>
// kernel: tpu_custom_call.1
$region0: #{tpu_custom_call.1}
  #allocation0 [shape = 'u32[]', space=smem, size = 0x4, offset = 0x4, fixed_abs, tag = 'smem constant byte address 0x4 - core index']
  #allocation1 [shape = 'u32[144,128]{1,0:T(1,128)}', space=vmem, size = 0x12000, scoped, tag = 'internal scratch']
  #allocation2 [shape = 'f32[1,1]{1,0:T(1,128)S(6)}', space=smem, size = 0x200, scoped, tag = 'scoped memory for tpu_custom_call.1']
  %s0 = inlined_call_operand.<no memory space> [shape: f32[1,1], index: 0, kind: input, shape index: {}]
  %s1 = inlined_call_operand.vmem [shape: f32[4,128], index: 1, kind: input, shape index: {}]
  %s2 = inlined_call_operand.vmem [shape: f32[32,4], index: 2, kind: input, shape index: {}]
  %s3 = inlined_call_operand.vmem [shape: f32[32,1], index: 3, kind: input, shape index: {}]
  %s4 = inlined_call_operand.vmem [shape: f32[32,32], index: 4, kind: input, shape index: {}]
  %s5 = inlined_call_operand.vmem [shape: f32[32,1], index: 5, kind: input, shape index: {}]
  %s6 = inlined_call_operand.vmem [shape: f32[2,32], index: 6, kind: input, shape index: {}]
  %s7 = inlined_call_operand.vmem [shape: f32[2,1], index: 7, kind: input, shape index: {}]
  %s8 = inlined_call_operand.hbm [shape: f32[2,128], index: 8, kind: output, shape index: {}]
  %s9 = sld [smem:[#allocation0]]
  $region42: #{tpu_custom_call.1} parent=0
    _
  %s11 = ssub.s32 1, %s9
  %s12 = scalar_select 0, %s11, %s9
  %13 = sst [smem:[#allocation2]] %s0
  $region1: #{tpu_custom_call.1} parent=0
    #allocation3 [shape = 'u8[1024]{0}', space=vmem, size = 0x400, scoped, tag = 'output window, operand 0, single buffered']
    #allocation4 [shape = 's32[1]{0}', space=sflag, size = 0x4, scoped, tag = 'scoped memory for tpu_custom_call.1']
    %14 = vsyncpa [#allocation4], 0
    // Predicated region
    $region2: #{tpu_custom_call.1} parent=1 // pred_check
      _
    $region3: #{tpu_custom_call.1} parent=1 // pred_check_branch
      %16 = sbr.rel (0) target = $region5
    $region4: #{tpu_custom_call.1} parent=1 // pred_region
      _
    $region5: #{tpu_custom_call.1} parent=1 // pred_fallthru
      _
    // Predicated region
    $region6: #{tpu_custom_call.1} parent=1 // pred_check
      _
    $region7: #{tpu_custom_call.1} parent=1 // pred_check_branch
      %18 = sbr.rel (0) target = $region9
    $region8: #{tpu_custom_call.1} parent=1 // pred_region
      _
    $region9: #{tpu_custom_call.1} parent=1 // pred_fallthru
      _
    // Predicated region
    $region10: #{tpu_custom_call.1} parent=1 // pred_check
      _
    $region11: #{tpu_custom_call.1} parent=1 // pred_check_branch
      %20 = sbr.rel (0) target = $region13
    $region12: #{tpu_custom_call.1} parent=1 // pred_region
      _
    $region13: #{tpu_custom_call.1} parent=1 // pred_fallthru
      _
    // Predicated region
    $region14: #{tpu_custom_call.1} parent=1 // pred_check
      _
    $region15: #{tpu_custom_call.1} parent=1 // pred_check_branch
      %22 = sbr.rel (0) target = $region17
    $region16: #{tpu_custom_call.1} parent=1 // pred_region
      _
    $region17: #{tpu_custom_call.1} parent=1 // pred_fallthru
      _
    // Predicated region
    $region18: #{tpu_custom_call.1} parent=1 // pred_check
      _
    $region19: #{tpu_custom_call.1} parent=1 // pred_check_branch
      %24 = sbr.rel (0) target = $region21
    $region20: #{tpu_custom_call.1} parent=1 // pred_region
      _
    $region21: #{tpu_custom_call.1} parent=1 // pred_fallthru
      _
    // Predicated region
    $region22: #{tpu_custom_call.1} parent=1 // pred_check
      _
    $region23: #{tpu_custom_call.1} parent=1 // pred_check_branch
      %26 = sbr.rel (0) target = $region25
    $region24: #{tpu_custom_call.1} parent=1 // pred_region
      _
    $region25: #{tpu_custom_call.1} parent=1 // pred_fallthru
      _
    // Predicated region
    $region26: #{tpu_custom_call.1} parent=1 // pred_check
      _
    $region27: #{tpu_custom_call.1} parent=1 // pred_check_branch
      %28 = sbr.rel (0) target = $region29
    $region28: #{tpu_custom_call.1} parent=1 // pred_region
      _
    $region29: #{tpu_custom_call.1} parent=1 // pred_fallthru
      _
    // Predicated region
    $region30: #{tpu_custom_call.1} parent=1 // pred_check
      _
    $region31: #{tpu_custom_call.1} parent=1 // pred_check_branch
      %30 = sbr.rel (0) target = $region33
    $region32: #{tpu_custom_call.1} parent=1 // pred_region
      _
    $region33: #{tpu_custom_call.1} parent=1 // pred_fallthru
      _
    %v31 = vld [vmem:[%s1] sm:$0xf]
    %v32 = vld [vmem:[%s2] sm:$0xff]
    %v33 = vld [vmem:[%s2 + $0x8] sm:$0xff]
    %v34 = vld [vmem:[%s2 + $0x10] sm:$0xff]
    %v35 = vld [vmem:[%s2 + $0x18] sm:$0xff]
    %v36 = vld [vmem:[%s3] sm:$0xff]
    %v37 = vld [vmem:[%s3 + $0x8] sm:$0xff]
    %v38 = vld [vmem:[%s3 + $0x10] sm:$0xff]
    %v39 = vld [vmem:[%s3 + $0x18] sm:$0xff]
    %41 = vset.pattern.permute.xlu0 0
    %42 = vperm.xlu0 %41, %v36
    %v43 = vpop.permute.xlu0 %42
    %46 = vset.pattern.permute.xlu0 0
    %47 = vperm.xlu0 %46, %v37
    %v48 = vpop.permute.xlu0 %47
    %51 = vset.pattern.permute.xlu0 0
    %52 = vperm.xlu0 %51, %v38
    %v53 = vpop.permute.xlu0 %52
    %56 = vset.pattern.permute.xlu0 0
    %57 = vperm.xlu0 %56, %v39
    %v58 = vpop.permute.xlu0 %57
    %vm60 = vcmask 31744
    %v62 = vsel %vm60, %v32, 0
    %v65 = vsel %vm60, %v33, 0
    %v68 = vsel %vm60, %v34, 0
    %v71 = vsel %vm60, %v35, 0
    %vm73 = vcmask 1043456
    %v75 = vsel %vm73, %v31, 0
    %77 = vmatprep.subr.mxu0 0.0
    %78 = vmatpush1.msra.mxu0 0.0
    %79 = vmatprep.subr.mxu0 0.0
    %80 = vmatpush1.msra.mxu0 0.0
    %81 = vmatprep.subr.mxu0 0.0
    %82 = vmatpush1.msra.mxu0 0.0
    %83 = vmatprep.subr.mxu0 0.0
    %84 = vmatpush1.msra.mxu0 0.0
    %85 = vmatprep.subr.mxu0 0.0
    %86 = vmatpush1.msra.mxu0 0.0
    %87 = vmatprep.subr.mxu0 0.0
    %88 = vmatpush1.msra.mxu0 0.0
    %89 = vmatprep.subr.mxu0 0.0
    %90 = vmatpush1.msra.mxu0 0.0
    %91 = vmatprep.subr.mxu0 0.0
    %92 = vmatpush1.msra.mxu0 0.0
    %93 = vmatprep.subr.mxu0 0.0
    %94 = vmatpush1.msra.mxu0 0.0
    %95 = vmatprep.subr.mxu0 0.0
    %96 = vmatpush1.msra.mxu0 0.0
    %97 = vmatprep.subr.mxu0 0.0
    %98 = vmatpush1.msra.mxu0 0.0
    %99 = vmatprep.subr.mxu0 0.0
    %100 = vmatpush1.msra.mxu0 0.0
    %101 = vmatprep.subr.mxu0 0.0
    %102 = vmatpush1.msra.mxu0 0.0
    %103 = vmatprep.subr.mxu0 0.0
    %104 = vmatpush1.msra.mxu0 0.0
    %105 = vmatprep.subr.mxu0 0.0
    %106 = vmatpush1.msra.mxu0 0.0
    %107 = vmatprep.subr.mxu0 0.0
    %108 = vmatpush1.msra.mxu0 %v75
    %109 = vmatprep.subr.mxu0 0.0
    %110 = vmatpush2.msra.mxu0 0.0
    %111 = vmatprep.subr.mxu0 0.0
    %112 = vmatpush2.msra.mxu0 0.0
    %113 = vmatprep.subr.mxu0 0.0
    %114 = vmatpush2.msra.mxu0 0.0
    %115 = vmatprep.subr.mxu0 0.0
    %116 = vmatpush2.msra.mxu0 0.0
    %117 = vmatprep.subr.mxu0 0.0
    %118 = vmatpush2.msra.mxu0 0.0
    %119 = vmatprep.subr.mxu0 0.0
    %120 = vmatpush2.msra.mxu0 0.0
    %121 = vmatprep.subr.mxu0 0.0
    %122 = vmatpush2.msra.mxu0 0.0
    %123 = vmatprep.subr.mxu0 0.0
    %124 = vmatpush2.msra.mxu0 0.0
    %125 = vmatprep.subr.mxu0 0.0
    %126 = vmatpush2.msra.mxu0 0.0
    %127 = vmatprep.subr.mxu0 0.0
    %128 = vmatpush2.msra.mxu0 0.0
    %129 = vmatprep.subr.mxu0 0.0
    %130 = vmatpush2.msra.mxu0 0.0
    %131 = vmatprep.subr.mxu0 0.0
    %132 = vmatpush2.msra.mxu0 0.0
    %133 = vmatprep.subr.mxu0 0.0
    %134 = vmatpush2.msra.mxu0 0.0
    %135 = vmatprep.subr.mxu0 0.0
    %136 = vmatpush2.msra.mxu0 0.0
    %137 = vmatprep.subr.mxu0 0.0
    %138 = vmatpush2.msra.mxu0 0.0
    %139 = vmatprep.subr.mxu0 0.0
    %140 = vmatpush2.msra.mxu0 0.0
    %141 = vmatprep.mubr.f32.mxu0 0.0
    %142 = vmatmul.mubr.f32.gmra.mxu0 %v62
    %v143 = vpop.f32.mrf.mxu0
    %v144 = vadd.f32 %v43, %v143
    %v145 = vpop.f32.mrf.mxu0
    %146 = vmatprep.mubr.f32.mxu0 0.0
    %147 = vmatmul.mubr.f32.gmra.mxu0 %v65
    %v148 = vpop.f32.mrf.mxu0
    %v149 = vadd.f32 %v48, %v148
    %v150 = vpop.f32.mrf.mxu0
    %151 = vmatprep.mubr.f32.mxu0 0.0
    %152 = vmatmul.mubr.f32.gmra.mxu0 %v68
    %v153 = vpop.f32.mrf.mxu0
    %v154 = vadd.f32 %v53, %v153
    %v155 = vpop.f32.mrf.mxu0
    %156 = vmatprep.mubr.f32.mxu0 0.0
    %157 = vmatmul.mubr.f32.gmra.mxu0 %v71
    %v158 = vpop.f32.mrf.mxu0
    %v159 = vadd.f32 %v58, %v158
    %v160 = vpop.f32.mrf.mxu0
    %161 = vdwg.mxu0
    %v162 = vmax.f32 %v144, 0.0
    %v163 = vmax.f32 %v149, 0.0
    %v164 = vmax.f32 %v154, 0.0
    %v165 = vmax.f32 %v159, 0.0
    %v166 = vld [vmem:[%s4] sm:$0xff]
    %v167 = vld [vmem:[%s4 + $0x8] sm:$0xff]
    %v168 = vld [vmem:[%s4 + $0x10] sm:$0xff]
    %v169 = vld [vmem:[%s4 + $0x18] sm:$0xff]
    %v170 = vld [vmem:[%s5] sm:$0xff]
    %v171 = vld [vmem:[%s5 + $0x8] sm:$0xff]
    %v172 = vld [vmem:[%s5 + $0x10] sm:$0xff]
    %v173 = vld [vmem:[%s5 + $0x18] sm:$0xff]
    %175 = vset.pattern.permute.xlu0 0
    %176 = vperm.xlu0 %175, %v170
    %v177 = vpop.permute.xlu0 %176
    %180 = vset.pattern.permute.xlu0 0
    %181 = vperm.xlu0 %180, %v171
    %v182 = vpop.permute.xlu0 %181
    %185 = vset.pattern.permute.xlu0 0
    %186 = vperm.xlu0 %185, %v172
    %v187 = vpop.permute.xlu0 %186
    %190 = vset.pattern.permute.xlu0 0
    %191 = vperm.xlu0 %190, %v173
    %v192 = vpop.permute.xlu0 %191
    %vm194 = vcmask 261120
    %v196 = vsel %vm194, %v166, 0
    %v199 = vsel %vm194, %v167, 0
    %v202 = vsel %vm194, %v168, 0
    %v205 = vsel %vm194, %v169, 0
    %207 = vmatprep.subr.mxu0 0.0
    %208 = vmatpush1.msra.mxu0 0.0
    %209 = vmatprep.subr.mxu0 0.0
    %210 = vmatpush1.msra.mxu0 0.0
    %211 = vmatprep.subr.mxu0 0.0
    %212 = vmatpush1.msra.mxu0 0.0
    %213 = vmatprep.subr.mxu0 0.0
    %214 = vmatpush1.msra.mxu0 0.0
    %215 = vmatprep.subr.mxu0 0.0
    %216 = vmatpush1.msra.mxu0 0.0
    %217 = vmatprep.subr.mxu0 0.0
    %218 = vmatpush1.msra.mxu0 0.0
    %219 = vmatprep.subr.mxu0 0.0
    %220 = vmatpush1.msra.mxu0 0.0
    %221 = vmatprep.subr.mxu0 0.0
    %222 = vmatpush1.msra.mxu0 0.0
    %223 = vmatprep.subr.mxu0 0.0
    %224 = vmatpush1.msra.mxu0 0.0
    %225 = vmatprep.subr.mxu0 0.0
    %226 = vmatpush1.msra.mxu0 0.0
    %227 = vmatprep.subr.mxu0 0.0
    %228 = vmatpush1.msra.mxu0 0.0
    %229 = vmatprep.subr.mxu0 0.0
    %230 = vmatpush1.msra.mxu0 0.0
    %231 = vmatprep.subr.mxu0 0.0
    %232 = vmatpush1.msra.mxu0 %v165
    %233 = vmatprep.subr.mxu0 0.0
    %234 = vmatpush1.msra.mxu0 %v164
    %235 = vmatprep.subr.mxu0 0.0
    %236 = vmatpush1.msra.mxu0 %v163
    %237 = vmatprep.subr.mxu0 0.0
    %238 = vmatpush1.msra.mxu0 %v162
    %239 = vmatprep.subr.mxu0 0.0
    %240 = vmatpush2.msra.mxu0 0.0
    %241 = vmatprep.subr.mxu0 0.0
    %242 = vmatpush2.msra.mxu0 0.0
    %243 = vmatprep.subr.mxu0 0.0
    %244 = vmatpush2.msra.mxu0 0.0
    %245 = vmatprep.subr.mxu0 0.0
    %246 = vmatpush2.msra.mxu0 0.0
    %247 = vmatprep.subr.mxu0 0.0
    %248 = vmatpush2.msra.mxu0 0.0
    %249 = vmatprep.subr.mxu0 0.0
    %250 = vmatpush2.msra.mxu0 0.0
    %251 = vmatprep.subr.mxu0 0.0
    %252 = vmatpush2.msra.mxu0 0.0
    %253 = vmatprep.subr.mxu0 0.0
    %254 = vmatpush2.msra.mxu0 0.0
    %255 = vmatprep.subr.mxu0 0.0
    %256 = vmatpush2.msra.mxu0 0.0
    %257 = vmatprep.subr.mxu0 0.0
    %258 = vmatpush2.msra.mxu0 0.0
    %259 = vmatprep.subr.mxu0 0.0
    %260 = vmatpush2.msra.mxu0 0.0
    %261 = vmatprep.subr.mxu0 0.0
    %262 = vmatpush2.msra.mxu0 0.0
    %263 = vmatprep.subr.mxu0 0.0
    %264 = vmatpush2.msra.mxu0 0.0
    %265 = vmatprep.subr.mxu0 0.0
    %266 = vmatpush2.msra.mxu0 0.0
    %267 = vmatprep.subr.mxu0 0.0
    %268 = vmatpush2.msra.mxu0 0.0
    %269 = vmatprep.subr.mxu0 0.0
    %270 = vmatpush2.msra.mxu0 0.0
    %271 = vmatprep.mubr.f32.mxu0 0.0
    %272 = vmatmul.mubr.f32.gmra.mxu0 %v196
    %v273 = vpop.f32.mrf.mxu0
    %v274 = vadd.f32 %v177, %v273
    %v275 = vpop.f32.mrf.mxu0
    %276 = vmatprep.mubr.f32.mxu0 0.0
    %277 = vmatmul.mubr.f32.gmra.mxu0 %v199
    %v278 = vpop.f32.mrf.mxu0
    %v279 = vadd.f32 %v182, %v278
    %v280 = vpop.f32.mrf.mxu0
    %281 = vmatprep.mubr.f32.mxu0 0.0
    %282 = vmatmul.mubr.f32.gmra.mxu0 %v202
    %v283 = vpop.f32.mrf.mxu0
    %v284 = vadd.f32 %v187, %v283
    %v285 = vpop.f32.mrf.mxu0
    %286 = vmatprep.mubr.f32.mxu0 0.0
    %287 = vmatmul.mubr.f32.gmra.mxu0 %v205
    %v288 = vpop.f32.mrf.mxu0
    %v289 = vadd.f32 %v192, %v288
    %v290 = vpop.f32.mrf.mxu0
    %291 = vdwg.mxu0
    %v292 = vmax.f32 %v274, 0.0
    %v293 = vmax.f32 %v279, 0.0
    %v294 = vmax.f32 %v284, 0.0
    %v295 = vmax.f32 %v289, 0.0
    %v296 = vld [vmem:[%s6] sm:$0x3]
    %v297 = vld [vmem:[%s7] sm:$0x3]
    %299 = vset.pattern.permute.xlu0 0
    %300 = vperm.xlu0 %299, %v297
    %v301 = vpop.permute.xlu0 %300
    %v304 = vsel %vm194, %v296, 0
    %306 = vmatprep.subr.mxu0 0.0
    %307 = vmatpush1.msra.mxu0 0.0
    %308 = vmatprep.subr.mxu0 0.0
    %309 = vmatpush1.msra.mxu0 0.0
    %310 = vmatprep.subr.mxu0 0.0
    %311 = vmatpush1.msra.mxu0 0.0
    %312 = vmatprep.subr.mxu0 0.0
    %313 = vmatpush1.msra.mxu0 0.0
    %314 = vmatprep.subr.mxu0 0.0
    %315 = vmatpush1.msra.mxu0 0.0
    %316 = vmatprep.subr.mxu0 0.0
    %317 = vmatpush1.msra.mxu0 0.0
    %318 = vmatprep.subr.mxu0 0.0
    %319 = vmatpush1.msra.mxu0 0.0
    %320 = vmatprep.subr.mxu0 0.0
    %321 = vmatpush1.msra.mxu0 0.0
    %322 = vmatprep.subr.mxu0 0.0
    %323 = vmatpush1.msra.mxu0 0.0
    %324 = vmatprep.subr.mxu0 0.0
    %325 = vmatpush1.msra.mxu0 0.0
    %326 = vmatprep.subr.mxu0 0.0
    %327 = vmatpush1.msra.mxu0 0.0
    %328 = vmatprep.subr.mxu0 0.0
    %329 = vmatpush1.msra.mxu0 0.0
    %330 = vmatprep.subr.mxu0 0.0
    %331 = vmatpush1.msra.mxu0 %v295
    %332 = vmatprep.subr.mxu0 0.0
    %333 = vmatpush1.msra.mxu0 %v294
    %334 = vmatprep.subr.mxu0 0.0
    %335 = vmatpush1.msra.mxu0 %v293
    %336 = vmatprep.subr.mxu0 0.0
    %337 = vmatpush1.msra.mxu0 %v292
    %338 = vmatprep.subr.mxu0 0.0
    %339 = vmatpush2.msra.mxu0 0.0
    %340 = vmatprep.subr.mxu0 0.0
    %341 = vmatpush2.msra.mxu0 0.0
    %342 = vmatprep.subr.mxu0 0.0
    %343 = vmatpush2.msra.mxu0 0.0
    %344 = vmatprep.subr.mxu0 0.0
    %345 = vmatpush2.msra.mxu0 0.0
    %346 = vmatprep.subr.mxu0 0.0
    %347 = vmatpush2.msra.mxu0 0.0
    %348 = vmatprep.subr.mxu0 0.0
    %349 = vmatpush2.msra.mxu0 0.0
    %350 = vmatprep.subr.mxu0 0.0
    %351 = vmatpush2.msra.mxu0 0.0
    %352 = vmatprep.subr.mxu0 0.0
    %353 = vmatpush2.msra.mxu0 0.0
    %354 = vmatprep.subr.mxu0 0.0
    %355 = vmatpush2.msra.mxu0 0.0
    %356 = vmatprep.subr.mxu0 0.0
    %357 = vmatpush2.msra.mxu0 0.0
    %358 = vmatprep.subr.mxu0 0.0
    %359 = vmatpush2.msra.mxu0 0.0
    %360 = vmatprep.subr.mxu0 0.0
    %361 = vmatpush2.msra.mxu0 0.0
    %362 = vmatprep.subr.mxu0 0.0
    %363 = vmatpush2.msra.mxu0 0.0
    %364 = vmatprep.subr.mxu0 0.0
    %365 = vmatpush2.msra.mxu0 0.0
    %366 = vmatprep.subr.mxu0 0.0
    %367 = vmatpush2.msra.mxu0 0.0
    %368 = vmatprep.subr.mxu0 0.0
    %369 = vmatpush2.msra.mxu0 0.0
    %370 = vmatprep.mubr.f32.mxu0 0.0
    %371 = vmatmul.mubr.f32.gmra.mxu0 %v304
    %v372 = vpop.f32.mrf.mxu0
    %v373 = vadd.f32 %v301, %v372
    %v374 = vpop.f32.mrf.mxu0
    %375 = vdwg.mxu0
    %s376 = sld [smem:[#allocation2]]
    %v377 = vtanh.pop %v373
    %v378 = vstv %s376
    %v379 = vmul.f32 %v378, %v377
    %380 = vst [vmem:[#allocation3] sm:$0x3] %v379
    // Predicated region
    $region34: #{tpu_custom_call.1} parent=1 // pred_check
      _
    $region35: #{tpu_custom_call.1} parent=1 // pred_check_branch
      %382 = sbr.rel (0) target = $region37
    $region36: #{tpu_custom_call.1} parent=1 // pred_region
      %s384 = ssub.s32 32, 32
      %385 = vsyncadd [#allocation4], %s384
      %s387 = sshll.u32 [#allocation3], 4
      %s388 = int_to_ptr.vmem [resolvable:$true] %s387
      %390 = dma.vmem_to_hbm [thread:$0]  %s388, 32, %s8, [#allocation4]
    $region37: #{tpu_custom_call.1} parent=1 // pred_fallthru
      _
    // Predicated region
    $region38: #{tpu_custom_call.1} parent=1 // pred_check
      _
    $region39: #{tpu_custom_call.1} parent=1 // pred_check_branch
      %392 = sbr.rel (0) target = $region41
    $region40: #{tpu_custom_call.1} parent=1 // pred_region
      %393 = dma.done [#allocation4], 32
    $region41: #{tpu_custom_call.1} parent=1 // pred_fallthru
      _
    %394 = vsyncpa [#allocation4], 1

</llo_original>
